<compile_context>
chip_gen: v5e
topology: v5e:2x2
jax: 0.10.0
libtpu: 0.0.40
codegen_flags: <defaults>
</compile_context>

<pallas_src>
import numpy as np
import jax
import jax.numpy as jnp
from jax.experimental import pallas as pl
from jax.experimental.pallas import tpu as pltpu


def _round_up(x, m):
    return (x + m - 1) // m * m


def _cdiv(a, b):
    return (a + b - 1) // b


def head_kernel(x_ref, w_ref, out_ref):
    """One fused projection tile.

    x_ref:   (TB, L_pad)   bf16 latent codes + ones column (bias fold), batch tile i
    w_ref:   (L_pad, TN)   bf16 fused [weight-gen | bias-gen] weights (+ bias row), tile j
    out_ref: (TB, TN)      f32 fused output tile (i, j), lane-dense
    """
    out_ref[...] = jnp.dot(
        x_ref[...], w_ref[...], preferred_element_type=jnp.float32
    ).astype(out_ref.dtype)


def prepare_head_params(w1_weight, w1_bias, b1_weight, b1_bias,
                        output_dim_in, output_dim_out,
                        *,
                        weight_dtype=jnp.bfloat16,
                        max_batch_tile=256,
                        vmem_budget_bytes=10 * 1024 * 1024,
                        min_feature_tiles=2):
    """One-time fusion + padding of the two generator projections.

    Call once at setup and reuse the result across forward passes (this is
    the hoisted concat/pad from the perf feedback).

    w1_weight: (latent_dim, Din*Dout)   (transposed vs torch's (out, in))
    w1_bias:   (Din*Dout,)
    b1_weight: (latent_dim, Dout)
    b1_bias:   (Dout,)
    Returns (w_fused_padded, meta).
    """
    L, wdim = w1_weight.shape
    assert wdim == output_dim_in * output_dim_out
    bdim = output_dim_out
    F = wdim + bdim

    # Fuse the two projections along the feature axis, then fold the fused
    # bias in as one extra contraction row (x gets a matching ones column).
    w_fused = jnp.concatenate([w1_weight, b1_weight], axis=1)          # (L, F)
    bias_fused = jnp.concatenate([w1_bias, b1_bias], axis=0)[None, :]  # (1, F)
    w_aug = jnp.concatenate([w_fused, bias_fused], axis=0)             # (L+1, F)

    L_aug = L + 1
    L_pad = _round_up(L_aug, 8)          # sublane multiple on the contraction dim

    # --- Feature tiling from a VMEM byte budget (not a fixed 512 cap) -------
    w_bytes = np.dtype(weight_dtype).itemsize
    out_bytes = 4
    F128 = _round_up(F, 128)
    # Per feature column, double-buffered: weight tile column + output tile column.
    per_col_bytes = 2 * (L_pad * w_bytes + max_batch_tile * out_bytes)
    tn_cap = max(128, (vmem_budget_bytes // per_col_bytes) // 128 * 128)
    n_tiles = max(_cdiv(F128, tn_cap), 1)
    if F128 >= 256:
        # Give both v7x TensorCores their own tile (no-op on v5e/v6e).
        n_tiles = max(n_tiles, min_feature_tiles)
    n_tiles = min(n_tiles, F128 // 128)
    TN = _round_up(_cdiv(F128, n_tiles), 128)
    F_pad = n_tiles * TN                 # waste bounded by < 128 lanes per tile

    w_p = jnp.zeros((L_pad, F_pad), weight_dtype)
    w_p = w_p.at[:L_aug, :F].set(w_aug.astype(weight_dtype))

    meta = dict(
        latent_dim=L,
        output_dim_in=output_dim_in,
        output_dim_out=output_dim_out,
        wdim=wdim,
        bdim=bdim,
        F=F,
        F_pad=F_pad,
        TN=TN,
        n_feature_tiles=n_tiles,
        L_pad=L_pad,
        max_batch_tile=max_batch_tile,
        weight_dtype=weight_dtype,
    )
    return w_p, meta


def head_forward(x, w_fused_padded, meta):
    """Pallas-backed equivalent of Head.forward.

    x: (B, latent_dim) float32
    w_fused_padded, meta: output of prepare_head_params (fused once at setup).
    Returns (w, b) with shapes (B, Dout, Din) and (B, Dout, 1), float32.
    """
    B, L = x.shape
    assert L == meta["latent_dim"]
    L_pad = meta["L_pad"]
    TN = meta["TN"]
    F_pad = meta["F_pad"]
    n_f = meta["n_feature_tiles"]
    wdim, bdim = meta["wdim"], meta["bdim"]
    Din, Dout = meta["output_dim_in"], meta["output_dim_out"]
    wdt = meta["weight_dtype"]

    # Batch tiling: sublane multiple, capped so x/output tiles stay within the
    # VMEM budget even for large B.
    TB = min(_round_up(max(B, 1), 8), meta["max_batch_tile"])
    B_pad = _round_up(max(B, 1), TB)
    n_b = B_pad // TB

    # Augment x with a ones column (bias fold) and zero-pad to (B_pad, L_pad);
    # cast to the MXU-native streaming dtype.
    x_aug = jnp.zeros((B_pad, L_pad), wdt)
    x_aug = x_aug.at[:B, :L].set(x.astype(wdt))
    x_aug = x_aug.at[:B, L].set(jnp.ones((B,), wdt))

    cost = pl.CostEstimate(
        flops=2 * B_pad * L_pad * F_pad,
        transcendentals=0,
        bytes_accessed=(x_aug.size * x_aug.dtype.itemsize
                        + w_fused_padded.size * w_fused_padded.dtype.itemsize
                        + B_pad * F_pad * 4),
    )

    out_pad = pl.pallas_call(
        head_kernel,
        out_shape=jax.ShapeDtypeStruct((B_pad, F_pad), jnp.float32),
        grid_spec=pl.GridSpec(
            # Feature axis OUTER so each weight tile is DMA'd once and reused
            # across all batch tiles (Pallas skips re-fetch of unchanged blocks).
            grid=(n_f, n_b),
            in_specs=[
                pl.BlockSpec((TB, L_pad), lambda j, i: (i, 0)),   # x batch tile
                pl.BlockSpec((L_pad, TN), lambda j, i: (0, j)),   # fused weights
            ],
            out_specs=pl.BlockSpec((TB, TN), lambda j, i: (i, j)),
        ),
        compiler_params=pltpu.CompilerParams(
            dimension_semantics=("parallel", "parallel")),
        cost_estimate=cost,
    )(x_aug, w_fused_padded)

    # Split the fused output (same row-major ordering as torch's .view).
    w_flat = out_pad[:B, :wdim]
    b_flat = out_pad[:B, wdim:wdim + bdim]
    w = w_flat.reshape(B, Dout, Din)
    b = b_flat.reshape(B, Dout, 1)
    return w, b


def init_head_params(key, latent_dim, output_dim_in, output_dim_out, stddev):
    """Synthetic init mirroring Head.init_layers:
    weights ~ U(-stddev, stddev), biases = 0.
    Weights are stored transposed vs torch ((in, out) instead of (out, in))."""
    k1, k2 = jax.random.split(key)
    wdim = output_dim_in * output_dim_out
    w1_weight = jax.random.uniform(
        k1, (latent_dim, wdim), jnp.float32, -stddev, stddev)
    b1_weight = jax.random.uniform(
        k2, (latent_dim, output_dim_out), jnp.float32, -stddev, stddev)
    w1_bias = jnp.zeros((wdim,), jnp.float32)
    b1_bias = jnp.zeros((output_dim_out,), jnp.float32)
    return w1_weight, w1_bias, b1_weight, b1_bias


def _reference(x, w1_weight, w1_bias, b1_weight, b1_bias, Din, Dout, wdt):
    """Plain-JAX f32 reference on the same quantized (wdt-rounded) inputs so
    we verify the kernel itself, not the intentional bf16 weight storage."""
    B = x.shape[0]
    xq = x.astype(wdt).astype(jnp.float32)
    w1q = w1_weight.astype(wdt).astype(jnp.float32)
    b1q = b1_weight.astype(wdt).astype(jnp.float32)
    w1b = w1_bias.astype(wdt).astype(jnp.float32)
    b1b = b1_bias.astype(wdt).astype(jnp.float32)
    w_ref = (xq @ w1q + w1b).reshape(B, Dout, Din)
    b_ref = (xq @ b1q + b1b).reshape(B, Dout, 1)
    return w_ref, b_ref


if __name__ == "__main__":
    # Small shapes consistent with the module's forward.
    batch = 2
    latent_dim = 32
    output_dim_in = 16
    output_dim_out = 8
    stddev = 0.05

    key = jax.random.PRNGKey(0)
    kx, kp, kb = jax.random.split(key, 3)
    x = jax.random.normal(kx, (batch, latent_dim), jnp.float32)

    w1_weight, w1_bias, b1_weight, b1_bias = init_head_params(
        kp, latent_dim, output_dim_in, output_dim_out, stddev)

    # --- One-time fusion/padding (hoisted out of the forward, perf item 1) ---
    w_fused_padded, meta = prepare_head_params(
        w1_weight, w1_bias, b1_weight, b1_bias,
        output_dim_in, output_dim_out)

    w, b = head_forward(x, w_fused_padded, meta)
    jax.block_until_ready((w, b))

    assert w.shape == (batch, output_dim_out, output_dim_in)
    assert b.shape == (batch, output_dim_out, 1)

    w_ref, b_ref = _reference(x, w1_weight, w1_bias, b1_weight, b1_bias,
                              output_dim_in, output_dim_out,
                              meta["weight_dtype"])
    assert jnp.allclose(w, w_ref, rtol=1e-3, atol=1e-4), "weight head mismatch"
    assert jnp.allclose(b, b_ref, rtol=1e-3, atol=1e-4), "bias head mismatch"

    # Extra check with non-zero biases to exercise the bias-fold path
    # (the spec init zeros biases, which would hide a bias-fold bug).
    kb1, kb2 = jax.random.split(kb)
    w1_bias_nz = jax.random.normal(kb1, w1_bias.shape, jnp.float32) * 0.1
    b1_bias_nz = jax.random.normal(kb2, b1_bias.shape, jnp.float32) * 0.1
    w_fp2, meta2 = prepare_head_params(
        w1_weight, w1_bias_nz, b1_weight, b1_bias_nz,
        output_dim_in, output_dim_out)
    w2, b2 = head_forward(x, w_fp2, meta2)
    jax.block_until_ready((w2, b2))
    w_ref2, b_ref2 = _reference(x, w1_weight, w1_bias_nz, b1_weight, b1_bias_nz,
                                output_dim_in, output_dim_out,
                                meta2["weight_dtype"])
    assert jnp.allclose(w2, w_ref2, rtol=1e-3, atol=1e-3), "weight head (bias) mismatch"
    assert jnp.allclose(b2, b_ref2, rtol=1e-3, atol=1e-3), "bias head (bias) mismatch"

    print("KERNEL_OK")
</pallas_src>

<mosaic_0001>
module attributes {stable_mosaic.version = 11 : i64} {
  func.func @head_kernel(%arg0: i32, %arg1: i32, %arg2: memref<8x40xbf16, #tpu.memory_space<vmem>>, %arg3: memref<40x128xbf16, #tpu.memory_space<vmem>>, %arg4: memref<8x128xf32, #tpu.memory_space<vmem>>) attributes {dimension_semantics = [#tpu.dimension_semantics<parallel>, #tpu.dimension_semantics<parallel>], iteration_bounds = array<i64: 2, 1>, scalar_prefetch = 0 : i64, scratch_operands = 0 : i64, tpu.core_type = #tpu.core_type<tc>, window_params = [{transform_indices = @transform_0, window_bounds = array<i64: 8, 40>}, {transform_indices = @transform_1, window_bounds = array<i64: 40, 128>}, {transform_indices = @transform_2, window_bounds = array<i64: 8, 128>}]} {
    %c0 = arith.constant 0 : index
    %c0_0 = arith.constant 0 : index
    %0 = vector.load %arg2[%c0, %c0_0] : memref<8x40xbf16, #tpu.memory_space<vmem>>, vector<8x40xbf16>
    %c0_1 = arith.constant 0 : index
    %c0_2 = arith.constant 0 : index
    %1 = vector.load %arg3[%c0_1, %c0_2] : memref<40x128xbf16, #tpu.memory_space<vmem>>, vector<40x128xbf16>
    %cst = arith.constant dense<0.000000e+00> : vector<8x128xf32>
    %2 = tpu.matmul %0, %1, %cst {dimension_numbers = #tpu.dot_dimension_numbers<[1], [0], [0], [1], [0, 0, 1, 1], [], []>} : vector<8x40xbf16>, vector<40x128xbf16>, vector<8x128xf32> -> vector<8x128xf32>
    %c0_3 = arith.constant 0 : index
    %c0_4 = arith.constant 0 : index
    %3 = vector.load %arg4[%c0_3, %c0_4] : memref<8x128xf32, #tpu.memory_space<vmem>>, vector<8x128xf32>
    tpu.vector_store %arg4[%c0_3, %c0_4], %2 {strides = array<i32>} : memref<8x128xf32, #tpu.memory_space<vmem>>, vector<8x128xf32>,
    return
  }
  func.func @transform_0(%arg0: i32, %arg1: i32) -> (i32, i32) {
    %c0_i32 = arith.constant 0 : i32
    %c0_i32_0 = arith.constant 0 : i32
    return %arg1, %c0_i32 : i32, i32
  }
  func.func @transform_1(%arg0: i32, %arg1: i32) -> (i32, i32) {
    %c0_i32 = arith.constant 0 : i32
    %c0_i32_0 = arith.constant 0 : i32
    return %c0_i32, %arg0 : i32, i32
  }
  func.func @transform_2(%arg0: i32, %arg1: i32) -> (i32, i32) {
    %c0_i32 = arith.constant 0 : i32
    return %arg1, %arg0 : i32, i32
  }
}

</mosaic_0001>

<llo_original>
// kernel: tpu_custom_call.1
$region0: #{tpu_custom_call.1}
  #allocation0 [shape = 'u32[]', space=smem, size = 0x4, offset = 0x4, fixed_abs, tag = 'smem constant byte address 0x4 - core index']
  #allocation1 [shape = 'u32[72,128]{1,0:T(1,128)}', space=vmem, size = 0x9000, scoped, tag = 'internal scratch']
  %s0 = inlined_call_operand.hbm [shape: bf16[8,40], index: 0, kind: input, shape index: {}]
  %s1 = inlined_call_operand.hbm [shape: bf16[40,256], index: 1, kind: input, shape index: {}]
  %s2 = inlined_call_operand.hbm [shape: f32[8,256], index: 2, kind: output, shape index: {}]
  %s3 = sld [smem:[#allocation0]]
  $region49: #{tpu_custom_call.1} parent=0
    _
  %s5 = ssub.s32 1, %s3
  %s6 = scalar_select 0, %s5, %s3
  $region1: #{tpu_custom_call.1} parent=0
    #allocation2 [shape = 'u8[2048]{0}', space=vmem, size = 0x800, scoped, tag = 'input window, operand 0, single buffered']
    #allocation3 [shape = 's32[2]{0}', space=sflag, size = 0x8, scoped, tag = 'scoped memory for tpu_custom_call.1']
    #allocation4 [shape = 's32[2]{0}', space=sflag, size = 0x8, scoped, tag = 'scoped memory for tpu_custom_call.1']
    #allocation5 [shape = 'u8[20480]{0}', space=vmem, size = 0x5000, scoped, tag = 'input window, operand 1']
    #allocation6 [shape = 's32[2]{0}', space=sflag, size = 0x8, scoped, tag = 'scoped memory for tpu_custom_call.1']
    #allocation7 [shape = 'u8[8192]{0}', space=vmem, size = 0x2000, scoped, tag = 'output window, operand 0']
    %7 = vsyncpa [#allocation3], 0
    %8 = vsyncpa [#allocation6], 0
    %s9 = scalar_lea.sflag [#allocation6], 1
    %10 = vsyncpa %s9, 0
    %11 = vsyncpa [#allocation4], 0
    %s12 = scalar_lea.sflag [#allocation4], 1
    %13 = vsyncpa %s12, 0
    loop: start=0, step=1, limit=4
    $region2: #{tpu_custom_call.1} parent=1 // loop_pre_header
      _
    $region3: #{tpu_custom_call.1} parent=1 // loop_header
      %s15 = sphi 0, %s19
      %p16 = scmp.ge.s32.totalorder %s15, 4
      %s22 = sphi 0, %s34
      %s23 = sphi 0, %s30
      %s24 = sphi 0, %s22
      %s25 = sphi 0, %s23
      %s26 = sphi 0, %s24
      %s27 = sphi 0, %s25
      %s37 = sphi 0, %s39
      %s40 = sphi 0, %s37
      %s41 = sphi 0, %s40
      %s57 = sphi 0, %s41
      %s63 = sphi 0, %s65
      %s66 = sphi 0, %s63
      %s67 = sphi 0, %s66
      %s83 = sphi 0, %s67
      %s91 = sphi 0, %s93
      %s94 = sphi 0, %s91
      %s95 = sphi 0, %s94
      %s111 = sphi 0, %s95
    $region4: #{tpu_custom_call.1} parent=1 // loop_header_branch
      %18 = sbr.rel (%p16) target = $region8
    $region5: #{tpu_custom_call.1} parent=1 // loop_body
      %s20 = ssub.s32 %s15, 1
      %s21 = ssub.s32 %s15, 2
      %s28 = sadd.s32 1, %s23
      %p29 = scmp.ge.s32.totalorder %s28, 1
      %s30 = scalar_select %p29, 0, %s28
      %s31 = sadd.s32 1, %s22
      %s32 = scalar_select %p29, %s31, %s22
      %p33 = scmp.ge.s32.totalorder %s32, 2
      %s34 = scalar_select %p33, 0, %s32
      %s35 = ssub.s32 %s23, %s30
      %p36 = scmp.eq.s32.totalorder %s35, 0
      %s38 = sadd.s32 %s37, 1
      %s39 = scalar_select %p36, %s37, %s38
      %p42 = pneg %p36
      %p43 = scmp.eq.s32.totalorder %s15, 1
      %p44 = por %p42, %p43
      %p45 = scmp.ne.s32.totalorder %s37, %s40
      %p46 = scmp.eq.s32.totalorder %s15, 0
      %p47 = por %p45, %p46
      %p48 = scmp.ne.s32.totalorder %s37, %s40
      %p49 = scmp.eq.s32.totalorder %s20, 1
      %p50 = por %p48, %p49
      %p51 = scmp.ne.s32.totalorder %s40, %s41
      %p52 = scmp.eq.s32.totalorder %s20, 0
      %p53 = por %p51, %p52
      %p54 = scmp.ne.s32.totalorder %s40, %s41
      %p55 = scmp.eq.s32.totalorder %s21, 1
      %p56 = por %p54, %p55
      %p58 = scmp.ne.s32.totalorder %s41, %s57
      %p59 = scmp.eq.s32.totalorder %s21, 0
      %p60 = por %p58, %p59
      %s61 = ssub.s32 %s22, %s34
      %p62 = scmp.eq.s32.totalorder %s61, 0
      %s64 = sadd.s32 %s63, 1
      %s65 = scalar_select %p62, %s63, %s64
      %p68 = pneg %p62
      %p69 = scmp.eq.s32.totalorder %s15, 1
      %p70 = por %p68, %p69
      %p71 = scmp.ne.s32.totalorder %s63, %s66
      %p72 = scmp.eq.s32.totalorder %s15, 0
      %p73 = por %p71, %p72
      %p74 = scmp.ne.s32.totalorder %s63, %s66
      %p75 = scmp.eq.s32.totalorder %s20, 1
      %p76 = por %p74, %p75
      %p77 = scmp.ne.s32.totalorder %s66, %s67
      %p78 = scmp.eq.s32.totalorder %s20, 0
      %p79 = por %p77, %p78
      %p80 = scmp.ne.s32.totalorder %s66, %s67
      %p81 = scmp.eq.s32.totalorder %s21, 1
      %p82 = por %p80, %p81
      %p84 = scmp.ne.s32.totalorder %s67, %s83
      %p85 = scmp.eq.s32.totalorder %s21, 0
      %p86 = por %p84, %p85
      %s87 = ssub.s32 %s23, %s30
      %s88 = ssub.s32 %s22, %s34
      %s89 = sor.u32 %s87, %s88
      %p90 = scmp.eq.s32.totalorder %s89, 0
      %s92 = sadd.s32 %s91, 1
      %s93 = scalar_select %p90, %s91, %s92
      %p96 = pneg %p90
      %p97 = scmp.eq.s32.totalorder %s15, 1
      %p98 = por %p96, %p97
      %p99 = scmp.ne.s32.totalorder %s91, %s94
      %p100 = scmp.eq.s32.totalorder %s15, 0
      %p101 = por %p99, %p100
      %p102 = scmp.ne.s32.totalorder %s91, %s94
      %p103 = scmp.eq.s32.totalorder %s20, 1
      %p104 = por %p102, %p103
      %p105 = scmp.ne.s32.totalorder %s94, %s95
      %p106 = scmp.eq.s32.totalorder %s20, 0
      %p107 = por %p105, %p106
      %p108 = scmp.ne.s32.totalorder %s94, %s95
      %p109 = scmp.eq.s32.totalorder %s21, 1
      %p110 = por %p108, %p109
      %p112 = scmp.ne.s32.totalorder %s95, %s111
      %p113 = scmp.eq.s32.totalorder %s21, 0
      %p114 = por %p112, %p113
      %p115 = scmp.le.s32.totalorder 1, %s15
      %p116 = scmp.lt.s32.totalorder %s15, 3
      %p117 = pnand %p115, %p116
      %p118 = pneg %p117
      // Predicated region
      $region9: #{tpu_custom_call.1} parent=5 // pred_check
        _
      $region10: #{tpu_custom_call.1} parent=5 // pred_check_branch
        %120 = sbr.rel (%p117) target = $region12
      $region11: #{tpu_custom_call.1} parent=5 // pred_region
        %s121 = ssub.s32 %s15, 1
        // Predicated region
        $region13: #{tpu_custom_call.1} parent=11 // pred_check
          %p122 = pneg %p53
        $region14: #{tpu_custom_call.1} parent=11 // pred_check_branch
          %124 = sbr.rel (%p122) target = $region16
        $region15: #{tpu_custom_call.1} parent=11 // pred_region
          %126 = vsyncadd [#allocation3], 0
          %s127 = smul.addr %s25, 4
          %s128 = scalar_lea.hbm %s0, %s127
          %s130 = sshll.u32 %s128, 4
          %s131 = int_to_ptr.hbm [resolvable:$true] %s130
          %s132 = sshll.u32 [#allocation2], 4
          %s133 = int_to_ptr.vmem [resolvable:$true] %s132
          %135 = dma.hbm_to_vmem [thread:$0]  %s131, 64, %s133, [#allocation3]
        $region16: #{tpu_custom_call.1} parent=11 // pred_fallthru
          _
      $region12: #{tpu_custom_call.1} parent=5 // pred_fallthru
        _
      %p136 = scmp.lt.s32.totalorder %s15, 2
      // Predicated region
      $region17: #{tpu_custom_call.1} parent=5 // pred_check
        %p137 = pneg %p136
      $region18: #{tpu_custom_call.1} parent=5 // pred_check_branch
        %139 = sbr.rel (%p137) target = $region20
      $region19: #{tpu_custom_call.1} parent=5 // pred_region
        // Predicated region
        $region21: #{tpu_custom_call.1} parent=19 // pred_check
          %p140 = pneg %p73
        $region22: #{tpu_custom_call.1} parent=19 // pred_check_branch
          %142 = sbr.rel (%p140) target = $region24
        $region23: #{tpu_custom_call.1} parent=19 // pred_region
          %s143 = sand.u32 %s63, 1
          %s144 = scalar_lea.sflag [#allocation6], %s143
          %s145 = sand.u32 %s63, 1
          %s146 = smul.addr %s145, 20
          %s147 = scalar_lea.vmem [#allocation5], %s146
          %149 = vsyncadd %s144, 0
          %s150 = smul.addr %s22, 4
          %s151 = scalar_lea.hbm %s1, %s150
          %s152 = sshll.u32 %s151, 4
          %s153 = int_to_ptr.hbm [resolvable:$true] %s152
          %s154 = sshll.u32 %s147, 4
          %s155 = int_to_ptr.vmem [resolvable:$true] %s154
          %160 = dma.hbm_to_vmem [thread:$0]  %s153, 320, %s155, %s144, 128, 64, 4
        $region24: #{tpu_custom_call.1} parent=19 // pred_fallthru
          _
      $region20: #{tpu_custom_call.1} parent=5 // pred_fallthru
        _
      %p161 = scmp.le.s32.totalorder 1, %s15
      %p162 = scmp.lt.s32.totalorder %s15, 3
      %p163 = pnand %p161, %p162
      %p164 = pneg %p163
      // Predicated region
      $region25: #{tpu_custom_call.1} parent=5 // pred_check
        _
      $region26: #{tpu_custom_call.1} parent=5 // pred_check_branch
        %166 = sbr.rel (%p163) target = $region28
      $region27: #{tpu_custom_call.1} parent=5 // pred_region
        %s167 = ssub.s32 %s15, 1
        // Predicated region
        $region29: #{tpu_custom_call.1} parent=27 // pred_check
          %p168 = pneg %p53
        $region30: #{tpu_custom_call.1} parent=27 // pred_check_branch
          %170 = sbr.rel (%p168) target = $region32
        $region31: #{tpu_custom_call.1} parent=27 // pred_region
          %172 = dma.done [#allocation3], 64
        $region32: #{tpu_custom_call.1} parent=27 // pred_fallthru
          _
        %s173 = sand.u32 %s66, 1
        %s174 = scalar_lea.sflag [#allocation6], %s173
        %s175 = sand.u32 %s66, 1
        %s176 = smul.addr %s175, 20
        %s177 = scalar_lea.vmem [#allocation5], %s176
        // Predicated region
        $region33: #{tpu_custom_call.1} parent=27 // pred_check
          %p178 = pneg %p79
        $region34: #{tpu_custom_call.1} parent=27 // pred_check_branch
          %180 = sbr.rel (%p178) target = $region36
        $region35: #{tpu_custom_call.1} parent=27 // pred_region
          %182 = dma.done %s174, 320
        $region36: #{tpu_custom_call.1} parent=27 // pred_fallthru
          _
        %p183 = pneg %p53
        %p184 = pneg %p50
        %s185 = sand.u32 %s66, 1
        %s186 = scalar_lea.sflag [#allocation6], %s185
        %s187 = sand.u32 %s66, 1
        %s188 = smul.addr %s187, 20
        %s189 = scalar_lea.vmem [#allocation5], %s188
        %p190 = pneg %p79
        %p191 = pneg %p76
        %p192 = pneg %p107
        %p193 = pneg %p104
        %s194 = sand.u32 %s94, 1
        %s195 = scalar_lea.sflag [#allocation4], %s194
        %s196 = sand.u32 %s94, 1
        %s197 = smul.addr %s196, 8
        %s198 = scalar_lea.vmem [#allocation7], %s197
        %v200 = vld [vmem:[#allocation2] sm:$0xf]
        %v201 = vld [vmem:[%s177] sm:$0xf]
        %v202 = vld [vmem:[%s177 + $0x4] sm:$0xf]
        %v203 = vld [vmem:[%s177 + $0x8] sm:$0xf]
        %v204 = vld [vmem:[%s177 + $0xc] sm:$0xf]
        %v205 = vld [vmem:[%s177 + $0x10] sm:$0xf]
        %v211 = vunpack.c.l.b16 %v201
        %v212 = vunpack.c.l.b16 %v202
        %v213 = vunpack.c.l.b16 %v203
        %v214 = vunpack.c.l.b16 %v204
        %v215 = vunpack.c.l.b16 %v205
        %v216 = vpack.c.b16 %v212, %v211
        %v217 = vpack.c.b16 %v214, %v213
        %v218 = vpack.c.b16 %v215, %v215
        %vm221 = vcmask 326656
        %v223 = vsel %vm221, %v200, 0
        %vm225 = vcmask 1043456
        %v227 = vsel %vm225, %v218, 0
        %229 = vmatpush.bf16.msra.mxu0 0
        %230 = vmatpush.bf16.msra.mxu0 0
        %231 = vmatpush.bf16.msra.mxu0 0
        %232 = vmatpush.bf16.msra.mxu0 0
        %233 = vmatpush.bf16.msra.mxu0 0
        %234 = vmatpush.bf16.msra.mxu0 %v227
        %235 = vmatpush.bf16.msra.mxu0 %v217
        %236 = vmatpush.bf16.msra.mxu0 %v216
        %237 = vmatmul.bf16.gmra.mxu0 %v223
        %v238 = vpop.f32.mrf.mxu0
        %v239 = vadd.f32 0.0, %v238
        %v240 = vpop.f32.mrf.mxu0
        %241 = vdwg.mxu0
        %242 = vst [vmem:[%s198] sm:$0xff] %v239
        %s243 = sand.u32 %s94, 1
        %s244 = scalar_lea.sflag [#allocation4], %s243
        %s245 = sand.u32 %s94, 1
        %s246 = smul.addr %s245, 8
        %s247 = scalar_lea.vmem [#allocation7], %s246
        // Predicated region
        $region37: #{tpu_custom_call.1} parent=27 // pred_check
          %p248 = pneg %p104
        $region38: #{tpu_custom_call.1} parent=27 // pred_check_branch
          %250 = sbr.rel (%p248) target = $region40
        $region39: #{tpu_custom_call.1} parent=27 // pred_region
          %252 = vsyncadd %s244, 0
          %s253 = smul.addr %s25, 2
          %s254 = sadd.s32 %s24, %s253
          %s255 = smul.addr %s254, 8
          %s256 = scalar_lea.hbm %s2, %s255
          %s258 = sshll.u32 %s247, 4
          %s259 = int_to_ptr.vmem [resolvable:$true] %s258
          %s260 = sshll.u32 %s256, 4
          %s261 = int_to_ptr.hbm [resolvable:$true] %s260
          %263 = dma.vmem_to_hbm [thread:$0]  %s259, 128, %s261, %s244
        $region40: #{tpu_custom_call.1} parent=27 // pred_fallthru
          _
      $region28: #{tpu_custom_call.1} parent=5 // pred_fallthru
        _
      %p264 = scmp.le.s32.totalorder 2, %s15
      // Predicated region
      $region41: #{tpu_custom_call.1} parent=5 // pred_check
        %p265 = pneg %p264
      $region42: #{tpu_custom_call.1} parent=5 // pred_check_branch
        %267 = sbr.rel (%p265) target = $region44
      $region43: #{tpu_custom_call.1} parent=5 // pred_region
        %s268 = ssub.s32 %s15, 2
        // Predicated region
        $region45: #{tpu_custom_call.1} parent=43 // pred_check
          %p269 = pneg %p110
        $region46: #{tpu_custom_call.1} parent=43 // pred_check_branch
          %271 = sbr.rel (%p269) target = $region48
        $region47: #{tpu_custom_call.1} parent=43 // pred_region
          %s272 = sand.u32 %s95, 1
          %s273 = scalar_lea.sflag [#allocation4], %s272
          %s274 = sand.u32 %s95, 1
          %s275 = smul.addr %s274, 8
          %s276 = scalar_lea.vmem [#allocation7], %s275
          %278 = dma.done %s273, 128
        $region48: #{tpu_custom_call.1} parent=43 // pred_fallthru
          _
      $region44: #{tpu_custom_call.1} parent=5 // pred_fallthru
        _
    $region6: #{tpu_custom_call.1} parent=1 // loop_footer
      %s19 = sadd.s32 1, %s15
    $region7: #{tpu_custom_call.1} parent=1 // loop_footer_branch
      %14 = sbr.rel target = $region3
    $region8: #{tpu_custom_call.1} parent=1 // loop_exit
      _
    %279 = vsyncpa [#allocation3], 1
    %s280 = scalar_lea.sflag [#allocation3], 1
    %281 = vsyncpa %s280, 1
    %282 = vsyncpa [#allocation6], 1
    %s283 = scalar_lea.sflag [#allocation6], 1
    %284 = vsyncpa %s283, 1
    %285 = vsyncpa [#allocation4], 1
    %s286 = scalar_lea.sflag [#allocation4], 1
    %287 = vsyncpa %s286, 1

</llo_original>
